<compile_context>
chip_gen: v6e
topology: v6e:2x2x1
jax: 0.10.0
libtpu: 0.0.40
codegen_flags: <defaults>
</compile_context>

<pallas_src>
import functools

import jax
import jax.numpy as jnp
from jax.experimental import pallas as pl
from jax.experimental.pallas import tpu as pltpu


def _filter_layer_kernel(x_ref, w1_ref, b1_ref, w2_ref, b2_ref, o_ref, acc_ref,
                         *, inv_hw, hw_total, needs_mask):
    # x_ref:   (bm, C, hw_tile)   native dtype
    # w1_ref:  (C, Hid)  f32      b1_ref: (1, Hid)    f32
    # w2_ref:  (Hid, OutPad) f32  b2_ref: (1, OutPad) f32
    # o_ref:   (bm, OutPad) f32
    # acc_ref: (bm, C) f32 partial-sum scratch (persists across spatial axis)
    hi = pl.program_id(1)
    hw_tile = x_ref.shape[-1]

    x = x_ref[...].astype(jnp.float32)
    if needs_mask:
        # cdiv spatial grid: zero the OOB tail lanes of the last chunk so
        # stale VMEM garbage never pollutes the mean.
        idx = jax.lax.broadcasted_iota(jnp.int32, x.shape, dimension=2)
        x = jnp.where(hi * hw_tile + idx < hw_total, x, 0.0)

    # Per-chunk lane reduction into the tiny f32 accumulator.
    chunk = jnp.sum(x, axis=-1)                                       # (bm, C)

    @pl.when(hi == 0)
    def _init():
        acc_ref[...] = chunk

    @pl.when(hi > 0)
    def _accum():
        acc_ref[...] += chunk

    @pl.when(hi == pl.num_programs(1) - 1)
    def _finalize():
        # AdaptiveAvgPool2d(1).view(b, c)
        y = acc_ref[...] * inv_hw                                     # (bm, C)
        # fc: Linear -> ReLU -> Linear -> Sigmoid
        h = jnp.dot(y, w1_ref[...], preferred_element_type=jnp.float32) + b1_ref[...]
        h = jnp.maximum(h, 0.0)
        z = jnp.dot(h, w2_ref[...], preferred_element_type=jnp.float32) + b2_ref[...]
        # exact sigmoid (exp runs on the EUP slot)
        o_ref[...] = 1.0 / (1.0 + jnp.exp(-z))


def _vmem_budgets():
    """(working-set budget, vmem_limit cap) picked per TPU generation."""
    try:
        cap = int(pltpu.get_tpu_info().vmem_capacity_bytes)
    except Exception:
        cap = 64 << 20                      # conservative (v7x-sized) fallback
    if cap >= (96 << 20):                   # v5e / v6e: 128 MiB physical VMEM
        return 72 << 20, 100 << 20
    return 24 << 20, 42 << 20               # v7x: 64 MiB physical / 32 scoped


def _pick_tiles(B, C, HW, x_itemsize, budget):
    # Batch tile: 8 rows when B > 8 (cdiv grid handles the remainder;
    # satisfies the (8,128) output-block rule), else the full batch.
    bm = 8 if B > 8 else B
    per_col = 2 * bm * C * x_itemsize       # double-buffered bytes per column
    # Prefer the whole spatial extent: one fully contiguous DMA per block.
    if per_col * HW <= budget:
        return bm, HW
    # Otherwise the largest 128-multiple whose double-buffered block fits.
    hw_tile = max(budget // per_col, 128)
    hw_tile = (hw_tile // 128) * 128
    hw_tile = min(hw_tile, ((HW + 127) // 128) * 128)
    return bm, hw_tile


def filter_layer(x, w1, b1, w2, b2):
    """x: (B, C, H, W) float (f32 or bf16).  w1: (Hid, C), b1: (Hid,),
    w2: (Out, Hid), b2: (Out,).  Returns the SE gate (B, Out, 1, 1) in f32."""
    B, C, H, W = x.shape
    hidden = w1.shape[0]
    out_planes = w2.shape[0]
    HW = H * W
    out_pad = ((out_planes + 127) // 128) * 128

    # Keep x in its native dtype; just flatten the spatial dims (view-only).
    x3 = x.reshape(B, C, HW)

    # Tiny parameter tensors: pre-transpose for (M,K)@(K,N) and pad the fc2
    # output width to a lane-dense multiple of 128 (sliced off below).
    w1_t = jnp.transpose(w1).astype(jnp.float32)                      # (C, Hid)
    b1_r = b1.reshape(1, hidden).astype(jnp.float32)                  # (1, Hid)
    w2_p = jnp.pad(jnp.transpose(w2).astype(jnp.float32),
                   ((0, 0), (0, out_pad - out_planes)))               # (Hid, OutPad)
    b2_p = jnp.pad(b2.reshape(1, out_planes).astype(jnp.float32),
                   ((0, 0), (0, out_pad - out_planes)))               # (1, OutPad)

    budget, limit_cap = _vmem_budgets()
    bm, hw_tile = _pick_tiles(B, C, HW, x.dtype.itemsize, budget)
    grid = (pl.cdiv(B, bm), pl.cdiv(HW, hw_tile))
    needs_mask = (HW % hw_tile) != 0

    # Explicit VMEM limit with headroom for compiler-internal scratch.
    x_blk = bm * C * hw_tile * x.dtype.itemsize
    param_b = (C * hidden + hidden + hidden * out_pad + out_pad) * 4
    out_blk = bm * out_pad * 4
    acc_blk = bm * C * 4
    est = 2 * x_blk + acc_blk + 2 * param_b + 2 * out_blk
    vmem_limit = int(min(max(est * 3 // 2, 16 << 20), limit_cap))

    cost = pl.CostEstimate(
        flops=2 * B * C * HW + 2 * B * C * hidden + 2 * B * hidden * out_planes,
        transcendentals=B * out_planes,
        bytes_accessed=x.size * x.dtype.itemsize
        + (w1.size + b1.size + w2.size + b2.size) * 4
        + B * out_planes * 4,
    )

    kernel = functools.partial(_filter_layer_kernel, inv_hw=1.0 / float(HW),
                               hw_total=HW, needs_mask=needs_mask)

    out = pl.pallas_call(
        kernel,
        out_shape=jax.ShapeDtypeStruct((B, out_pad), jnp.float32),
        grid_spec=pltpu.PrefetchScalarGridSpec(
            num_scalar_prefetch=0,
            grid=grid,
            in_specs=[
                pl.BlockSpec((bm, C, hw_tile), lambda bi, hi: (bi, 0, hi)),
                pl.BlockSpec((C, hidden), lambda bi, hi: (0, 0)),
                pl.BlockSpec((1, hidden), lambda bi, hi: (0, 0)),
                pl.BlockSpec((hidden, out_pad), lambda bi, hi: (0, 0)),
                pl.BlockSpec((1, out_pad), lambda bi, hi: (0, 0)),
            ],
            out_specs=pl.BlockSpec((bm, out_pad), lambda bi, hi: (bi, 0)),
            scratch_shapes=[pltpu.VMEM((bm, C), jnp.float32)],
        ),
        compiler_params=pltpu.CompilerParams(
            dimension_semantics=("parallel", "arbitrary"),
            vmem_limit_bytes=vmem_limit,
        ),
        cost_estimate=cost,
    )(x3, w1_t, b1_r, w2_p, b2_p)

    return out[:, :out_planes].reshape(B, out_planes, 1, 1)


def init_filter_layer_params(key, in_planes, out_planes, reduction=16):
    """Deterministic init matching the nn.Linear shapes in FilterLayer."""
    hidden = out_planes // reduction
    k1, k2, k3, k4 = jax.random.split(key, 4)
    # PyTorch Linear default: U(-1/sqrt(fan_in), 1/sqrt(fan_in))
    lim1 = 1.0 / jnp.sqrt(jnp.float32(in_planes))
    lim2 = 1.0 / jnp.sqrt(jnp.float32(hidden))
    w1 = jax.random.uniform(k1, (hidden, in_planes), jnp.float32, -lim1, lim1)
    b1 = jax.random.uniform(k2, (hidden,), jnp.float32, -lim1, lim1)
    w2 = jax.random.uniform(k3, (out_planes, hidden), jnp.float32, -lim2, lim2)
    b2 = jax.random.uniform(k4, (out_planes,), jnp.float32, -lim2, lim2)
    return w1, b1, w2, b2


def _reference(x, w1, b1, w2, b2):
    """Pure-JAX reference of FilterLayer.forward for correctness check."""
    B, C, H, W = x.shape
    y = jnp.mean(x.astype(jnp.float32), axis=(2, 3))     # avg_pool(1).view(b, c)
    h = jnp.maximum(y @ w1.T + b1, 0.0)
    z = jax.nn.sigmoid(h @ w2.T + b2)
    return z.reshape(B, -1, 1, 1)


if __name__ == "__main__":
    # Small, module-consistent shapes: in_planes == C of the input.
    B, C, H, W = 2, 4, 16, 16
    in_planes = C
    out_planes = 64          # divisible by reduction=16 -> hidden = 4
    reduction = 16

    key = jax.random.PRNGKey(0)
    kx, kp = jax.random.split(key)
    x = jax.random.normal(kx, (B, C, H, W), jnp.float32)
    w1, b1, w2, b2 = init_filter_layer_params(kp, in_planes, out_planes, reduction)

    out = filter_layer(x, w1, b1, w2, b2)
    out = jax.block_until_ready(out)

    ref = _reference(x, w1, b1, w2, b2)
    assert out.shape == (B, out_planes, 1, 1), out.shape
    assert jnp.allclose(out, ref, atol=1e-5, rtol=1e-5), "mismatch vs reference"

    print("KERNEL_OK")
</pallas_src>

<mosaic_0001>
module attributes {stable_mosaic.version = 11 : i64} {
  func.func @_filter_layer_kernel(%arg0: i32, %arg1: i32, %arg2: memref<2x4x256xf32, #tpu.memory_space<vmem>>, %arg3: memref<4x4xf32, #tpu.memory_space<vmem>>, %arg4: memref<1x4xf32, #tpu.memory_space<vmem>>, %arg5: memref<4x128xf32, #tpu.memory_space<vmem>>, %arg6: memref<1x128xf32, #tpu.memory_space<vmem>>, %arg7: memref<2x128xf32, #tpu.memory_space<vmem>>, %arg8: memref<2x4xf32, #tpu.memory_space<vmem>>) attributes {dimension_semantics = [#tpu.dimension_semantics<parallel>, #tpu.dimension_semantics<arbitrary>], iteration_bounds = array<i64: 1, 1>, scalar_prefetch = 0 : i64, scratch_operands = 1 : i64, tpu.core_type = #tpu.core_type<tc>, window_params = [{transform_indices = @transform_0, window_bounds = array<i64: 2, 4, 256>}, {pipeline_mode = #tpu.pipeline_mode<synchronous>, transform_indices = @transform_1, window_bounds = array<i64: 4, 4>}, {pipeline_mode = #tpu.pipeline_mode<synchronous>, transform_indices = @transform_2, window_bounds = array<i64: 1, 4>}, {pipeline_mode = #tpu.pipeline_mode<synchronous>, transform_indices = @transform_3, window_bounds = array<i64: 4, 128>}, {pipeline_mode = #tpu.pipeline_mode<synchronous>, transform_indices = @transform_4, window_bounds = array<i64: 1, 128>}, {transform_indices = @transform_5, window_bounds = array<i64: 2, 128>}]} {
    %c0 = arith.constant 0 : index
    %c0_0 = arith.constant 0 : index
    %c0_1 = arith.constant 0 : index
    %0 = vector.load %arg2[%c0, %c0_0, %c0_1] : memref<2x4x256xf32, #tpu.memory_space<vmem>>, vector<2x4x256xf32>
    %cst = arith.constant dense<0.000000e+00> : vector<2x4xf32>
    %1 = vector.multi_reduction <add>, %0, %cst [2] : vector<2x4x256xf32> to vector<2x4xf32>
    %c0_i32 = arith.constant 0 : i32
    %2 = arith.cmpi eq, %arg1, %c0_i32 : i32
    %3 = arith.extui %2 : i1 to i32
    %c0_i32_2 = arith.constant 0 : i32
    %4 = arith.cmpi ne, %3, %c0_i32_2 : i32
    scf.if %4 {
      %c0_7 = arith.constant 0 : index
      %c0_8 = arith.constant 0 : index
      %11 = vector.load %arg8[%c0_7, %c0_8] : memref<2x4xf32, #tpu.memory_space<vmem>>, vector<2x4xf32>
      tpu.vector_store %arg8[%c0_7, %c0_8], %1 {strides = array<i32>} : memref<2x4xf32, #tpu.memory_space<vmem>>, vector<2x4xf32>,
    } else {
    }
    %c0_i32_3 = arith.constant 0 : i32
    %5 = arith.cmpi sgt, %arg1, %c0_i32_3 : i32
    %6 = arith.extui %5 : i1 to i32
    %c0_i32_4 = arith.constant 0 : i32
    %7 = arith.cmpi ne, %6, %c0_i32_4 : i32
    scf.if %7 {
      %c0_7 = arith.constant 0 : index
      %c0_8 = arith.constant 0 : index
      %11 = vector.load %arg8[%c0_7, %c0_8] : memref<2x4xf32, #tpu.memory_space<vmem>>, vector<2x4xf32>
      %12 = arith.addf %11, %1 : vector<2x4xf32>
      %c0_9 = arith.constant 0 : index
      %c0_10 = arith.constant 0 : index
      %13 = vector.load %arg8[%c0_9, %c0_10] : memref<2x4xf32, #tpu.memory_space<vmem>>, vector<2x4xf32>
      tpu.vector_store %arg8[%c0_9, %c0_10], %12 {strides = array<i32>} : memref<2x4xf32, #tpu.memory_space<vmem>>, vector<2x4xf32>,
    } else {
    }
    %c0_i32_5 = arith.constant 0 : i32
    %8 = arith.cmpi eq, %arg1, %c0_i32_5 : i32
    %9 = arith.extui %8 : i1 to i32
    %c0_i32_6 = arith.constant 0 : i32
    %10 = arith.cmpi ne, %9, %c0_i32_6 : i32
    scf.if %10 {
      %c0_7 = arith.constant 0 : index
      %c0_8 = arith.constant 0 : index
      %11 = vector.load %arg8[%c0_7, %c0_8] : memref<2x4xf32, #tpu.memory_space<vmem>>, vector<2x4xf32>
      %cst_9 = arith.constant 3.906250e-03 : f32
      %12 = vector.broadcast %cst_9 : f32 to vector<2x4xf32>
      %13 = arith.mulf %11, %12 : vector<2x4xf32>
      %c0_10 = arith.constant 0 : index
      %c0_11 = arith.constant 0 : index
      %14 = vector.load %arg3[%c0_10, %c0_11] : memref<4x4xf32, #tpu.memory_space<vmem>>, vector<4x4xf32>
      %cst_12 = arith.constant dense<0.000000e+00> : vector<2x4xf32>
      %15 = tpu.matmul %13, %14, %cst_12 {dimension_numbers = #tpu.dot_dimension_numbers<[1], [0], [0], [1], [0, 0, 1, 1], [], []>} : vector<2x4xf32>, vector<4x4xf32>, vector<2x4xf32> -> vector<2x4xf32>
      %c0_13 = arith.constant 0 : index
      %c0_14 = arith.constant 0 : index
      %16 = vector.load %arg4[%c0_13, %c0_14] : memref<1x4xf32, #tpu.memory_space<vmem>>, vector<1x4xf32>
      %17 = vector.broadcast %16 : vector<1x4xf32> to vector<2x4xf32>
      %18 = arith.addf %15, %17 : vector<2x4xf32>
      %cst_15 = arith.constant 0.000000e+00 : f32
      %19 = vector.broadcast %cst_15 : f32 to vector<2x4xf32>
      %20 = arith.maximumf %18, %19 : vector<2x4xf32>
      %c0_16 = arith.constant 0 : index
      %c0_17 = arith.constant 0 : index
      %21 = vector.load %arg5[%c0_16, %c0_17] : memref<4x128xf32, #tpu.memory_space<vmem>>, vector<4x128xf32>
      %cst_18 = arith.constant dense<0.000000e+00> : vector<2x128xf32>
      %22 = tpu.matmul %20, %21, %cst_18 {dimension_numbers = #tpu.dot_dimension_numbers<[1], [0], [0], [1], [0, 0, 1, 1], [], []>} : vector<2x4xf32>, vector<4x128xf32>, vector<2x128xf32> -> vector<2x128xf32>
      %c0_19 = arith.constant 0 : index
      %c0_20 = arith.constant 0 : index
      %23 = vector.load %arg6[%c0_19, %c0_20] : memref<1x128xf32, #tpu.memory_space<vmem>>, vector<1x128xf32>
      %24 = vector.broadcast %23 : vector<1x128xf32> to vector<2x128xf32>
      %25 = arith.addf %22, %24 : vector<2x128xf32>
      %cst_21 = arith.constant 0.000000e+00 : f32
      %26 = vector.broadcast %cst_21 : f32 to vector<2x128xf32>
      %27 = arith.subf %26, %25 : vector<2x128xf32>
      %28 = math.exp %27 : vector<2x128xf32>
      %cst_22 = arith.constant 1.000000e+00 : f32
      %29 = vector.broadcast %cst_22 : f32 to vector<2x128xf32>
      %30 = arith.addf %29, %28 : vector<2x128xf32>
      %cst_23 = arith.constant 1.000000e+00 : f32
      %31 = vector.broadcast %cst_23 : f32 to vector<2x128xf32>
      %32 = arith.divf %31, %30 : vector<2x128xf32>
      %c0_24 = arith.constant 0 : index
      %c0_25 = arith.constant 0 : index
      %33 = vector.load %arg7[%c0_24, %c0_25] : memref<2x128xf32, #tpu.memory_space<vmem>>, vector<2x128xf32>
      tpu.vector_store %arg7[%c0_24, %c0_25], %32 {strides = array<i32>} : memref<2x128xf32, #tpu.memory_space<vmem>>, vector<2x128xf32>,
    } else {
    }
    return
  }
  func.func @transform_0(%arg0: i32, %arg1: i32) -> (i32, i32, i32) {
    %c0_i32 = arith.constant 0 : i32
    %c0_i32_0 = arith.constant 0 : i32
    return %arg0, %c0_i32, %arg1 : i32, i32, i32
  }
  func.func @transform_1(%arg0: i32, %arg1: i32) -> (i32, i32) {
    %c0_i32 = arith.constant 0 : i32
    %c0_i32_0 = arith.constant 0 : i32
    %c0_i32_1 = arith.constant 0 : i32
    return %c0_i32, %c0_i32_0 : i32, i32
  }
  func.func @transform_2(%arg0: i32, %arg1: i32) -> (i32, i32) {
    %c0_i32 = arith.constant 0 : i32
    %c0_i32_0 = arith.constant 0 : i32
    %c0_i32_1 = arith.constant 0 : i32
    return %c0_i32, %c0_i32_0 : i32, i32
  }
  func.func @transform_3(%arg0: i32, %arg1: i32) -> (i32, i32) {
    %c0_i32 = arith.constant 0 : i32
    %c0_i32_0 = arith.constant 0 : i32
    %c0_i32_1 = arith.constant 0 : i32
    return %c0_i32, %c0_i32_0 : i32, i32
  }
  func.func @transform_4(%arg0: i32, %arg1: i32) -> (i32, i32) {
    %c0_i32 = arith.constant 0 : i32
    %c0_i32_0 = arith.constant 0 : i32
    %c0_i32_1 = arith.constant 0 : i32
    return %c0_i32, %c0_i32_0 : i32, i32
  }
  func.func @transform_5(%arg0: i32, %arg1: i32) -> (i32, i32) {
    %c0_i32 = arith.constant 0 : i32
    %c0_i32_0 = arith.constant 0 : i32
    return %arg0, %c0_i32 : i32, i32
  }
}

</mosaic_0001>

<llo_original>
// kernel: tpu_custom_call.1
$region0: #{tpu_custom_call.1}
  #allocation0 [shape = 'u32[]', space=smem, size = 0x4, offset = 0x4, fixed_abs, tag = 'smem constant byte address 0x4 - core index']
  #allocation1 [shape = 'u32[144,128]{1,0:T(1,128)}', space=vmem, size = 0x12000, scoped, tag = 'internal scratch']
  #allocation2 [shape = 'f32[2,4]{1,0:T(2,128)}', space=vmem, size = 0x400, scoped, tag = 'scratch operand']
  %s0 = inlined_call_operand.hbm [shape: f32[2,4,256], index: 0, kind: input, shape index: {}]
  %s1 = inlined_call_operand.hbm [shape: f32[4,4], index: 1, kind: input, shape index: {}]
  %s2 = inlined_call_operand.vmem [shape: f32[1,4], index: 2, kind: input, shape index: {}]
  %s3 = inlined_call_operand.vmem [shape: f32[4,128], index: 3, kind: input, shape index: {}]
  %s4 = inlined_call_operand.vmem [shape: f32[1,128], index: 4, kind: input, shape index: {}]
  %s5 = inlined_call_operand.hbm [shape: f32[2,128], index: 5, kind: output, shape index: {}]
  %s6 = sld [smem:[#allocation0]]
  $region50: #{tpu_custom_call.1} parent=0
    _
  %s8 = ssub.s32 1, %s6
  %s9 = scalar_select 0, %s8, %s6
  $region1: #{tpu_custom_call.1} parent=0
    #allocation3 [shape = 'u8[8192]{0}', space=vmem, size = 0x2000, scoped, tag = 'input window, operand 0, single buffered']
    #allocation4 [shape = 's32[1]{0}', space=sflag, size = 0x4, scoped, tag = 'scoped memory for tpu_custom_call.1']
    #allocation5 [shape = 's32[1]{0}', space=sflag, size = 0x4, scoped, tag = 'scoped memory for tpu_custom_call.1']
    #allocation6 [shape = 'u8[2048]{0}', space=vmem, size = 0x800, scoped, tag = 'input window, operand 1, single buffered']
    #allocation7 [shape = 's32[1]{0}', space=sflag, size = 0x4, scoped, tag = 'scoped memory for tpu_custom_call.1']
    #allocation8 [shape = 'u8[1024]{0}', space=vmem, size = 0x400, scoped, tag = 'output window, operand 0, single buffered']
    %10 = vsyncpa [#allocation4], 0
    %11 = vsyncpa [#allocation7], 0
    %12 = vsyncpa [#allocation5], 0
    // Predicated region
    $region2: #{tpu_custom_call.1} parent=1 // pred_check
      _
    $region3: #{tpu_custom_call.1} parent=1 // pred_check_branch
      %14 = sbr.rel (0) target = $region5
    $region4: #{tpu_custom_call.1} parent=1 // pred_region
      %s16 = ssub.s32 256, 256
      %17 = vsyncadd [#allocation4], %s16
      %s18 = sshll.u32 [#allocation3], 4
      %s19 = int_to_ptr.vmem [resolvable:$true] %s18
      %24 = dma.hbm_to_vmem [thread:$0]  %s0, 256, %s19, [#allocation4], 128, 128, 8
    $region5: #{tpu_custom_call.1} parent=1 // pred_fallthru
      _
    // Predicated region
    $region6: #{tpu_custom_call.1} parent=1 // pred_check
      _
    $region7: #{tpu_custom_call.1} parent=1 // pred_check_branch
      %26 = sbr.rel (0) target = $region9
    $region8: #{tpu_custom_call.1} parent=1 // pred_region
      %s28 = ssub.s32 64, 64
      %29 = vsyncadd [#allocation7], %s28
      %s31 = sshll.u32 [#allocation6], 4
      %s32 = int_to_ptr.vmem [resolvable:$true] %s31
      %34 = dma.hbm_to_vmem [thread:$0]  %s1, 64, %s32, [#allocation7]
    $region9: #{tpu_custom_call.1} parent=1 // pred_fallthru
      _
    // Predicated region
    $region10: #{tpu_custom_call.1} parent=1 // pred_check
      _
    $region11: #{tpu_custom_call.1} parent=1 // pred_check_branch
      %36 = sbr.rel (0) target = $region13
    $region12: #{tpu_custom_call.1} parent=1 // pred_region
      _
    $region13: #{tpu_custom_call.1} parent=1 // pred_fallthru
      _
    // Predicated region
    $region14: #{tpu_custom_call.1} parent=1 // pred_check
      _
    $region15: #{tpu_custom_call.1} parent=1 // pred_check_branch
      %38 = sbr.rel (0) target = $region17
    $region16: #{tpu_custom_call.1} parent=1 // pred_region
      _
    $region17: #{tpu_custom_call.1} parent=1 // pred_fallthru
      _
    // Predicated region
    $region18: #{tpu_custom_call.1} parent=1 // pred_check
      _
    $region19: #{tpu_custom_call.1} parent=1 // pred_check_branch
      %40 = sbr.rel (0) target = $region21
    $region20: #{tpu_custom_call.1} parent=1 // pred_region
      _
    $region21: #{tpu_custom_call.1} parent=1 // pred_fallthru
      _
    // Predicated region
    $region22: #{tpu_custom_call.1} parent=1 // pred_check
      _
    $region23: #{tpu_custom_call.1} parent=1 // pred_check_branch
      %42 = sbr.rel (0) target = $region25
    $region24: #{tpu_custom_call.1} parent=1 // pred_region
      %43 = dma.done [#allocation4], 256
    $region25: #{tpu_custom_call.1} parent=1 // pred_fallthru
      _
    // Predicated region
    $region26: #{tpu_custom_call.1} parent=1 // pred_check
      _
    $region27: #{tpu_custom_call.1} parent=1 // pred_check_branch
      %45 = sbr.rel (0) target = $region29
    $region28: #{tpu_custom_call.1} parent=1 // pred_region
      %46 = dma.done [#allocation7], 64
    $region29: #{tpu_custom_call.1} parent=1 // pred_fallthru
      _
    %v47 = vld [vmem:[#allocation3] sm:$0xff]
    %v48 = vld [vmem:[#allocation3 + $0x8] sm:$0xff]
    %v51 = vcombine.high %v47, %v47
    %v52 = vcombine.high %v48, %v48
    %vm55 = vcmask 1043456
    %v56 = vsel %vm55, %v47, 0.0
    %v57 = vsel %vm55, %v51, 0.0
    %v58 = vadd.f32 %v56, %v57
    %59 = vadd.xlane.f32.xlu0 %v58
    %v60 = vpop.xlane.xlu0 %59
    %v61 = vsel %vm55, %v48, 0.0
    %v62 = vsel %vm55, %v52, 0.0
    %v63 = vadd.f32 %v61, %v62
    %64 = vadd.xlane.f32.xlu0 %v63
    %v65 = vpop.xlane.xlu0 %64
    %p66 = scmp.eq.s32.totalorder 0, 0
    // Predicated region
    $region30: #{tpu_custom_call.1} parent=1 // pred_check
      %p67 = pneg %p66
    $region31: #{tpu_custom_call.1} parent=1 // pred_check_branch
      %69 = sbr.rel (%p67) target = $region33
    $region32: #{tpu_custom_call.1} parent=1 // pred_region
      %v72 = vlaneseq
      %v73 = vand.u32 %v72, 127
      %v74 = vlaneseq
      %v75 = vshrl.u32 %v74, 7
      %v76 = vsub.s32 %v73, %v75
      %v77 = vrot.slane %v60, %v76
      %v78 = vlaneseq
      %v79 = vshrl.u32 %v78, 7
      %v80 = vsub.s32 %v73, %v79
      %v81 = vrot.slane %v65, %v80
      %vm82 = vcmask 1041409
      %v83 = vsel %vm82, %v81, %v77
      %vm85 = vcmask 25600
      %86 = vst.msk [vmem:[#allocation2] sm:$0x3] %vm85, %v83
    $region33: #{tpu_custom_call.1} parent=1 // pred_fallthru
      _
    %p87 = scmp.gt.s32.totalorder 0, 0
    // Predicated region
    $region34: #{tpu_custom_call.1} parent=1 // pred_check
      %p88 = pneg %p87
    $region35: #{tpu_custom_call.1} parent=1 // pred_check_branch
      %90 = sbr.rel (%p88) target = $region37
    $region36: #{tpu_custom_call.1} parent=1 // pred_region
      %v91 = vld [vmem:[#allocation2] sm:$0x3]
      %v94 = vlaneseq
      %v95 = vand.u32 %v94, 127
      %v96 = vlaneseq
      %v97 = vshrl.u32 %v96, 7
      %v98 = vsub.s32 %v95, %v97
      %v99 = vrot.slane %v60, %v98
      %v100 = vlaneseq
      %v101 = vshrl.u32 %v100, 7
      %v102 = vsub.s32 %v95, %v101
      %v103 = vrot.slane %v65, %v102
      %vm104 = vcmask 1041409
      %v105 = vsel %vm104, %v103, %v99
      %v107 = vadd.f32 %v91, %v105
      %vm108 = vcmask 25600
      %109 = vst.msk [vmem:[#allocation2] sm:$0x3] %vm108, %v107
    $region37: #{tpu_custom_call.1} parent=1 // pred_fallthru
      _
    // Predicated region
    $region38: #{tpu_custom_call.1} parent=1 // pred_check
      %p110 = pneg %p66
    $region39: #{tpu_custom_call.1} parent=1 // pred_check_branch
      %112 = sbr.rel (%p110) target = $region41
    $region40: #{tpu_custom_call.1} parent=1 // pred_region
      %v113 = vld [vmem:[#allocation2] sm:$0x3]
      %v114 = vmul.f32 %v113, 0.00390625
      %v115 = vld [vmem:[#allocation6] sm:$0xf]
      %v116 = vld [vmem:[%s2] sm:$0x1]
      %v118 = vlaneseq
      %v119 = vshrl.u32 %v118, 7
      %v120 = vsub.s32 0, %v119
      %v121 = vrot.slane %v116, %v120
      %vm123 = vcmask 31744
      %v125 = vsel %vm123, %v114, 0
      %v128 = vsel %vm55, %v115, 0
      %130 = vmatprep.subr.mxu0 0.0
      %131 = vmatpush1.msra.mxu0 0.0
      %132 = vmatprep.subr.mxu0 0.0
      %133 = vmatpush1.msra.mxu0 0.0
      %134 = vmatprep.subr.mxu0 0.0
      %135 = vmatpush1.msra.mxu0 0.0
      %136 = vmatprep.subr.mxu0 0.0
      %137 = vmatpush1.msra.mxu0 0.0
      %138 = vmatprep.subr.mxu0 0.0
      %139 = vmatpush1.msra.mxu0 0.0
      %140 = vmatprep.subr.mxu0 0.0
      %141 = vmatpush1.msra.mxu0 0.0
      %142 = vmatprep.subr.mxu0 0.0
      %143 = vmatpush1.msra.mxu0 0.0
      %144 = vmatprep.subr.mxu0 0.0
      %145 = vmatpush1.msra.mxu0 0.0
      %146 = vmatprep.subr.mxu0 0.0
      %147 = vmatpush1.msra.mxu0 0.0
      %148 = vmatprep.subr.mxu0 0.0
      %149 = vmatpush1.msra.mxu0 0.0
      %150 = vmatprep.subr.mxu0 0.0
      %151 = vmatpush1.msra.mxu0 0.0
      %152 = vmatprep.subr.mxu0 0.0
      %153 = vmatpush1.msra.mxu0 0.0
      %154 = vmatprep.subr.mxu0 0.0
      %155 = vmatpush1.msra.mxu0 0.0
      %156 = vmatprep.subr.mxu0 0.0
      %157 = vmatpush1.msra.mxu0 0.0
      %158 = vmatprep.subr.mxu0 0.0
      %159 = vmatpush1.msra.mxu0 0.0
      %160 = vmatprep.subr.mxu0 0.0
      %161 = vmatpush1.msra.mxu0 %v128
      %162 = vmatprep.subr.mxu0 0.0
      %163 = vmatpush2.msra.mxu0 0.0
      %164 = vmatprep.subr.mxu0 0.0
      %165 = vmatpush2.msra.mxu0 0.0
      %166 = vmatprep.subr.mxu0 0.0
      %167 = vmatpush2.msra.mxu0 0.0
      %168 = vmatprep.subr.mxu0 0.0
      %169 = vmatpush2.msra.mxu0 0.0
      %170 = vmatprep.subr.mxu0 0.0
      %171 = vmatpush2.msra.mxu0 0.0
      %172 = vmatprep.subr.mxu0 0.0
      %173 = vmatpush2.msra.mxu0 0.0
      %174 = vmatprep.subr.mxu0 0.0
      %175 = vmatpush2.msra.mxu0 0.0
      %176 = vmatprep.subr.mxu0 0.0
      %177 = vmatpush2.msra.mxu0 0.0
      %178 = vmatprep.subr.mxu0 0.0
      %179 = vmatpush2.msra.mxu0 0.0
      %180 = vmatprep.subr.mxu0 0.0
      %181 = vmatpush2.msra.mxu0 0.0
      %182 = vmatprep.subr.mxu0 0.0
      %183 = vmatpush2.msra.mxu0 0.0
      %184 = vmatprep.subr.mxu0 0.0
      %185 = vmatpush2.msra.mxu0 0.0
      %186 = vmatprep.subr.mxu0 0.0
      %187 = vmatpush2.msra.mxu0 0.0
      %188 = vmatprep.subr.mxu0 0.0
      %189 = vmatpush2.msra.mxu0 0.0
      %190 = vmatprep.subr.mxu0 0.0
      %191 = vmatpush2.msra.mxu0 0.0
      %192 = vmatprep.subr.mxu0 0.0
      %193 = vmatpush2.msra.mxu0 0.0
      %194 = vmatprep.mubr.f32.mxu0 0.0
      %195 = vmatmul.mubr.f32.gmra.mxu0 %v125
      %v196 = vpop.f32.mrf.mxu0
      %v197 = vadd.f32 %v121, %v196
      %v198 = vpop.f32.mrf.mxu0
      %199 = vdwg.mxu0
      %v200 = vmax.f32 %v197, 0.0
      %v201 = vld [vmem:[%s3] sm:$0xf]
      %v202 = vld [vmem:[%s4] sm:$0x1]
      %v204 = vlaneseq
      %v205 = vshrl.u32 %v204, 7
      %v206 = vsub.s32 0, %v205
      %v207 = vrot.slane %v202, %v206
      %v210 = vsel %vm123, %v200, 0
      %v213 = vsel %vm55, %v201, 0
      %215 = vmatprep.subr.mxu0 0.0
      %216 = vmatpush1.msra.mxu0 0.0
      %217 = vmatprep.subr.mxu0 0.0
      %218 = vmatpush1.msra.mxu0 0.0
      %219 = vmatprep.subr.mxu0 0.0
      %220 = vmatpush1.msra.mxu0 0.0
      %221 = vmatprep.subr.mxu0 0.0
      %222 = vmatpush1.msra.mxu0 0.0
      %223 = vmatprep.subr.mxu0 0.0
      %224 = vmatpush1.msra.mxu0 0.0
      %225 = vmatprep.subr.mxu0 0.0
      %226 = vmatpush1.msra.mxu0 0.0
      %227 = vmatprep.subr.mxu0 0.0
      %228 = vmatpush1.msra.mxu0 0.0
      %229 = vmatprep.subr.mxu0 0.0
      %230 = vmatpush1.msra.mxu0 0.0
      %231 = vmatprep.subr.mxu0 0.0
      %232 = vmatpush1.msra.mxu0 0.0
      %233 = vmatprep.subr.mxu0 0.0
      %234 = vmatpush1.msra.mxu0 0.0
      %235 = vmatprep.subr.mxu0 0.0
      %236 = vmatpush1.msra.mxu0 0.0
      %237 = vmatprep.subr.mxu0 0.0
      %238 = vmatpush1.msra.mxu0 0.0
      %239 = vmatprep.subr.mxu0 0.0
      %240 = vmatpush1.msra.mxu0 0.0
      %241 = vmatprep.subr.mxu0 0.0
      %242 = vmatpush1.msra.mxu0 0.0
      %243 = vmatprep.subr.mxu0 0.0
      %244 = vmatpush1.msra.mxu0 0.0
      %245 = vmatprep.subr.mxu0 0.0
      %246 = vmatpush1.msra.mxu0 %v213
      %247 = vmatprep.subr.mxu0 0.0
      %248 = vmatpush2.msra.mxu0 0.0
      %249 = vmatprep.subr.mxu0 0.0
      %250 = vmatpush2.msra.mxu0 0.0
      %251 = vmatprep.subr.mxu0 0.0
      %252 = vmatpush2.msra.mxu0 0.0
      %253 = vmatprep.subr.mxu0 0.0
      %254 = vmatpush2.msra.mxu0 0.0
      %255 = vmatprep.subr.mxu0 0.0
      %256 = vmatpush2.msra.mxu0 0.0
      %257 = vmatprep.subr.mxu0 0.0
      %258 = vmatpush2.msra.mxu0 0.0
      %259 = vmatprep.subr.mxu0 0.0
      %260 = vmatpush2.msra.mxu0 0.0
      %261 = vmatprep.subr.mxu0 0.0
      %262 = vmatpush2.msra.mxu0 0.0
      %263 = vmatprep.subr.mxu0 0.0
      %264 = vmatpush2.msra.mxu0 0.0
      %265 = vmatprep.subr.mxu0 0.0
      %266 = vmatpush2.msra.mxu0 0.0
      %267 = vmatprep.subr.mxu0 0.0
      %268 = vmatpush2.msra.mxu0 0.0
      %269 = vmatprep.subr.mxu0 0.0
      %270 = vmatpush2.msra.mxu0 0.0
      %271 = vmatprep.subr.mxu0 0.0
      %272 = vmatpush2.msra.mxu0 0.0
      %273 = vmatprep.subr.mxu0 0.0
      %274 = vmatpush2.msra.mxu0 0.0
      %275 = vmatprep.subr.mxu0 0.0
      %276 = vmatpush2.msra.mxu0 0.0
      %277 = vmatprep.subr.mxu0 0.0
      %278 = vmatpush2.msra.mxu0 0.0
      %279 = vmatprep.mubr.f32.mxu0 0.0
      %280 = vmatmul.mubr.f32.gmra.mxu0 %v210
      %v281 = vpop.f32.mrf.mxu0
      %v282 = vadd.f32 %v207, %v281
      %v283 = vpop.f32.mrf.mxu0
      %284 = vdwg.mxu0
      %v285 = vsub.f32 0.0, %v282
      %v286 = vmul.f32 %v285, 1.442695
      %v287 = vpow.pop %v286
      %v288 = vadd.f32 %v287, 1.0
      %v289 = vrcp.pop %v288
      %v290 = vmul.f32 1.0, %v289
      %291 = vst [vmem:[#allocation8] sm:$0x3] %v290
    $region41: #{tpu_custom_call.1} parent=1 // pred_fallthru
      _
    // Predicated region
    $region42: #{tpu_custom_call.1} parent=1 // pred_check
      _
    $region43: #{tpu_custom_call.1} parent=1 // pred_check_branch
      %293 = sbr.rel (0) target = $region45
    $region44: #{tpu_custom_call.1} parent=1 // pred_region
      %s295 = ssub.s32 32, 32
      %296 = vsyncadd [#allocation5], %s295
      %s298 = sshll.u32 [#allocation8], 4
      %s299 = int_to_ptr.vmem [resolvable:$true] %s298
      %301 = dma.vmem_to_hbm [thread:$0]  %s299, 32, %s5, [#allocation5]
    $region45: #{tpu_custom_call.1} parent=1 // pred_fallthru
      _
    // Predicated region
    $region46: #{tpu_custom_call.1} parent=1 // pred_check
      _
    $region47: #{tpu_custom_call.1} parent=1 // pred_check_branch
      %303 = sbr.rel (0) target = $region49
    $region48: #{tpu_custom_call.1} parent=1 // pred_region
      %304 = dma.done [#allocation5], 32
    $region49: #{tpu_custom_call.1} parent=1 // pred_fallthru
      _
    %305 = vsyncpa [#allocation4], 1
    %306 = vsyncpa [#allocation7], 1
    %307 = vsyncpa [#allocation5], 1

</llo_original>
